<compile_context>
chip_gen: v5e
topology: v5e:2x2
jax: 0.10.0
libtpu: 0.0.40
codegen_flags: <defaults>
</compile_context>

<pallas_src>
import math

import jax
import jax.numpy as jnp
from jax.experimental import pallas as pl
from jax.experimental.pallas import tpu as pltpu

LANE = 512           # lane-contiguous last dim (multiple of 128)
TM_ROWS = 2048       # rows per block -> 2048 * 512 * 4 B = 4 MiB f32 per block
VMEM_LIMIT = 32 * 1024 * 1024   # safe on v5e/v6e/v7x; holds 2x(in+out) buffers


def poly3_kernel(coef_ref, x_ref, o_ref):
    # coef_ref: SMEM (4,) f32 -> scalars a, b, c, d (same for every grid step)
    # x_ref/o_ref: VMEM (tm, LANE) f32 tile for this grid step
    a = coef_ref[0]
    b = coef_ref[1]
    c = coef_ref[2]
    d = coef_ref[3]
    x = x_ref[...]
    # Horner form: a + x*(b + x*(c + x*d))
    o_ref[...] = a + x * (b + x * (c + x * d))


def poly3(x, a, b, c, d):
    """Evaluate a + b*x + c*x^2 + d*x^3 elementwise with a Pallas TPU kernel.

    x: float32 array of arbitrary shape (flattened internally).
    a, b, c, d: scalar float32 parameters.
    """
    x = jnp.asarray(x, jnp.float32)
    orig_shape = x.shape
    x1d = x.reshape(-1)
    n = x1d.shape[0]

    # Pad only to a multiple of the lane width (skip entirely when aligned).
    pad = (-n) % LANE
    x_flat = jnp.pad(x1d, (0, pad)) if pad else x1d
    n_pad = n + pad
    rows = n_pad // LANE
    x2d = x_flat.reshape(rows, LANE)

    # Block size: full array for small inputs (single grid step), otherwise
    # TM_ROWS-row tiles (~4 MiB) streamed through a pipelined 1-D grid.
    tm = rows if rows <= TM_ROWS else TM_ROWS
    grid = (pl.cdiv(rows, tm),)

    coef = jnp.stack([jnp.asarray(a, jnp.float32),
                      jnp.asarray(b, jnp.float32),
                      jnp.asarray(c, jnp.float32),
                      jnp.asarray(d, jnp.float32)])

    out2d = pl.pallas_call(
        poly3_kernel,
        out_shape=jax.ShapeDtypeStruct((rows, LANE), jnp.float32),
        grid=grid,
        in_specs=[
            pl.BlockSpec(memory_space=pltpu.SMEM),          # coefficients
            pl.BlockSpec((tm, LANE), lambda i: (i, 0)),     # x tile
        ],
        out_specs=pl.BlockSpec((tm, LANE), lambda i: (i, 0)),
        compiler_params=pltpu.CompilerParams(
            dimension_semantics=("parallel",),
            vmem_limit_bytes=VMEM_LIMIT),
    )(coef, x2d)

    out = out2d.reshape(n_pad)
    out = out[:n] if pad else out
    return out.reshape(orig_shape)


if __name__ == "__main__":
    key = jax.random.PRNGKey(0)
    ka, kb, kc, kd = jax.random.split(key, 4)
    # Deterministic "randn(())"-style scalar parameters.
    a = jax.random.normal(ka, ())
    b = jax.random.normal(kb, ())
    c = jax.random.normal(kc, ())
    d = jax.random.normal(kd, ())

    # Matches the reference script's input: linspace(-pi, pi, 2000).
    x = jnp.linspace(-math.pi, math.pi, 2000, dtype=jnp.float32)
    y = jax.block_until_ready(poly3(x, a, b, c, d))
    y_ref = a + b * x + c * x**2 + d * x**3
    assert y.shape == (2000,)
    assert jnp.allclose(y, y_ref, atol=1e-5, rtol=1e-5)

    # Also exercise the gridded (multi-block, ragged-tail) path.
    x_big = jnp.linspace(-math.pi, math.pi, 600_000, dtype=jnp.float32)
    y_big = jax.block_until_ready(poly3(x_big, a, b, c, d))
    y_big_ref = a + b * x_big + c * x_big**2 + d * x_big**3
    assert y_big.shape == (600_000,)
    assert jnp.allclose(y_big, y_big_ref, atol=1e-5, rtol=1e-5)

    # Lane-aligned path (no pad / no trailing slice).
    x_al = jnp.linspace(-math.pi, math.pi, 4 * TM_ROWS * LANE, dtype=jnp.float32)
    y_al = jax.block_until_ready(poly3(x_al, a, b, c, d))
    y_al_ref = a + b * x_al + c * x_al**2 + d * x_al**3
    assert jnp.allclose(y_al, y_al_ref, atol=1e-5, rtol=1e-5)

    print("KERNEL_OK")
</pallas_src>

<mosaic_0001>
module attributes {stable_mosaic.version = 11 : i64} {
  func.func @poly3_kernel(%arg0: i32, %arg1: memref<4xf32, #tpu.memory_space<smem>>, %arg2: memref<4x512xf32, #tpu.memory_space<vmem>>, %arg3: memref<4x512xf32, #tpu.memory_space<vmem>>) attributes {dimension_semantics = [#tpu.dimension_semantics<parallel>], iteration_bounds = array<i64: 1>, scalar_prefetch = 0 : i64, scratch_operands = 0 : i64, tpu.core_type = #tpu.core_type<tc>, window_params = [{transform_indices = @transform_0, window_bounds = array<i64: 4>}, {transform_indices = @transform_1, window_bounds = array<i64: 4, 512>}, {transform_indices = @transform_2, window_bounds = array<i64: 4, 512>}]} {
    %c0 = arith.constant 0 : index
    %0 = memref.load %arg1[%c0] : memref<4xf32, #tpu.memory_space<smem>>
    %c1 = arith.constant 1 : index
    %1 = memref.load %arg1[%c1] : memref<4xf32, #tpu.memory_space<smem>>
    %c2 = arith.constant 2 : index
    %2 = memref.load %arg1[%c2] : memref<4xf32, #tpu.memory_space<smem>>
    %c3 = arith.constant 3 : index
    %3 = memref.load %arg1[%c3] : memref<4xf32, #tpu.memory_space<smem>>
    %c0_0 = arith.constant 0 : index
    %c0_1 = arith.constant 0 : index
    %4 = vector.load %arg2[%c0_0, %c0_1] : memref<4x512xf32, #tpu.memory_space<vmem>>, vector<4x512xf32>
    %5 = vector.broadcast %3 : f32 to vector<4x512xf32>
    %6 = arith.mulf %4, %5 : vector<4x512xf32>
    %7 = vector.broadcast %2 : f32 to vector<4x512xf32>
    %8 = arith.addf %7, %6 : vector<4x512xf32>
    %9 = arith.mulf %4, %8 : vector<4x512xf32>
    %10 = vector.broadcast %1 : f32 to vector<4x512xf32>
    %11 = arith.addf %10, %9 : vector<4x512xf32>
    %12 = arith.mulf %4, %11 : vector<4x512xf32>
    %13 = vector.broadcast %0 : f32 to vector<4x512xf32>
    %14 = arith.addf %13, %12 : vector<4x512xf32>
    %c0_2 = arith.constant 0 : index
    %c0_3 = arith.constant 0 : index
    %15 = vector.load %arg3[%c0_2, %c0_3] : memref<4x512xf32, #tpu.memory_space<vmem>>, vector<4x512xf32>
    tpu.vector_store %arg3[%c0_2, %c0_3], %14 {strides = array<i32>} : memref<4x512xf32, #tpu.memory_space<vmem>>, vector<4x512xf32>,
    return
  }
  func.func @transform_0(%arg0: i32) -> i32 {
    %c0_i32 = arith.constant 0 : i32
    %c0_i32_0 = arith.constant 0 : i32
    return %c0_i32 : i32
  }
  func.func @transform_1(%arg0: i32) -> (i32, i32) {
    %c0_i32 = arith.constant 0 : i32
    %c0_i32_0 = arith.constant 0 : i32
    return %arg0, %c0_i32 : i32, i32
  }
  func.func @transform_2(%arg0: i32) -> (i32, i32) {
    %c0_i32 = arith.constant 0 : i32
    %c0_i32_0 = arith.constant 0 : i32
    return %arg0, %c0_i32 : i32, i32
  }
}

</mosaic_0001>

<llo_original>
// kernel: tpu_custom_call.1
$region0: #{tpu_custom_call.1}
  #allocation0 [shape = 'u32[]', space=smem, size = 0x4, offset = 0x4, fixed_abs, tag = 'smem constant byte address 0x4 - core index']
  #allocation1 [shape = 'u32[72,128]{1,0:T(1,128)}', space=vmem, size = 0x9000, scoped, tag = 'internal scratch']
  %s0 = inlined_call_operand.hbm [shape: f32[4], index: 0, kind: input, shape index: {}]
  %s1 = inlined_call_operand.hbm [shape: f32[4,512], index: 1, kind: input, shape index: {}]
  %s2 = inlined_call_operand.hbm [shape: f32[4,512], index: 2, kind: output, shape index: {}]
  %s3 = sld [smem:[#allocation0]]
  $region26: #{tpu_custom_call.1} parent=0
    _
  %s5 = ssub.s32 1, %s3
  %s6 = scalar_select 0, %s5, %s3
  $region1: #{tpu_custom_call.1} parent=0
    #allocation2 [shape = 'u8[512]{0}', space=smem, size = 0x200, scoped, tag = 'input window, operand 0, single buffered']
    #allocation3 [shape = 's32[1]{0}', space=sflag, size = 0x4, scoped, tag = 'scoped memory for tpu_custom_call.1']
    #allocation4 [shape = 's32[1]{0}', space=sflag, size = 0x4, scoped, tag = 'scoped memory for tpu_custom_call.1']
    #allocation5 [shape = 's32[1]{0}', space=sflag, size = 0x4, scoped, tag = 'scoped memory for tpu_custom_call.1']
    #allocation6 [shape = 'u8[8192]{0}', space=vmem, size = 0x2000, scoped, tag = 'input window, operand 1, single buffered']
    #allocation7 [shape = 'u8[8192]{0}', space=vmem, size = 0x2000, scoped, tag = 'output window, operand 0, single buffered']
    %7 = vsyncpa [#allocation5], 0
    %8 = vsyncpa [#allocation3], 0
    %9 = vsyncpa [#allocation4], 0
    // Predicated region
    $region2: #{tpu_custom_call.1} parent=1 // pred_check
      _
    $region3: #{tpu_custom_call.1} parent=1 // pred_check_branch
      %11 = sbr.rel (0) target = $region5
    $region4: #{tpu_custom_call.1} parent=1 // pred_region
      %13 = vsyncadd [#allocation5], 0
      %s15 = sshll.u32 %s0, 4
      %s16 = int_to_ptr.hbm [resolvable:$true] %s15
      %18 = dma.hbm_to_smem %s16, 16, [#allocation2], [#allocation5]
    $region5: #{tpu_custom_call.1} parent=1 // pred_fallthru
      _
    // Predicated region
    $region6: #{tpu_custom_call.1} parent=1 // pred_check
      _
    $region7: #{tpu_custom_call.1} parent=1 // pred_check_branch
      %20 = sbr.rel (0) target = $region9
    $region8: #{tpu_custom_call.1} parent=1 // pred_region
      %22 = vsyncadd [#allocation3], 0
      %s24 = sshll.u32 %s1, 4
      %s25 = int_to_ptr.hbm [resolvable:$true] %s24
      %s26 = sshll.u32 [#allocation6], 4
      %s27 = int_to_ptr.vmem [resolvable:$true] %s26
      %29 = dma.hbm_to_vmem [thread:$0]  %s25, 256, %s27, [#allocation3]
    $region9: #{tpu_custom_call.1} parent=1 // pred_fallthru
      _
    // Predicated region
    $region10: #{tpu_custom_call.1} parent=1 // pred_check
      _
    $region11: #{tpu_custom_call.1} parent=1 // pred_check_branch
      %31 = sbr.rel (0) target = $region13
    $region12: #{tpu_custom_call.1} parent=1 // pred_region
      %33 = dma.done [#allocation5], 16
    $region13: #{tpu_custom_call.1} parent=1 // pred_fallthru
      _
    // Predicated region
    $region14: #{tpu_custom_call.1} parent=1 // pred_check
      _
    $region15: #{tpu_custom_call.1} parent=1 // pred_check_branch
      %35 = sbr.rel (0) target = $region17
    $region16: #{tpu_custom_call.1} parent=1 // pred_region
      %37 = dma.done [#allocation3], 256
    $region17: #{tpu_custom_call.1} parent=1 // pred_fallthru
      _
    %38 = sfence
    %s39 = sld [smem:[#allocation2]]
    %s40 = sld [smem:[#allocation2 + $0x1]]
    %s41 = sld [smem:[#allocation2 + $0x2]]
    %s42 = sld [smem:[#allocation2 + $0x3]]
    %v43 = vld [vmem:[#allocation6] sm:$0xff]
    %v44 = vld [vmem:[#allocation6 + $0x8] sm:$0xff]
    %v45 = vstv %s42
    %v46 = vmul.f32 %v43, %v45
    %v47 = vmul.f32 %v44, %v45
    %v48 = vstv %s41
    %v49 = vadd.f32 %v48, %v46
    %v50 = vadd.f32 %v48, %v47
    %v51 = vmul.f32 %v43, %v49
    %v52 = vmul.f32 %v44, %v50
    %v53 = vstv %s40
    %v54 = vadd.f32 %v53, %v51
    %v55 = vadd.f32 %v53, %v52
    %v56 = vmul.f32 %v43, %v54
    %v57 = vmul.f32 %v44, %v55
    %v58 = vstv %s39
    %v59 = vadd.f32 %v58, %v56
    %v60 = vadd.f32 %v58, %v57
    %61 = vst [vmem:[#allocation7] sm:$0xff] %v59
    %62 = vst [vmem:[#allocation7 + $0x8] sm:$0xff] %v60
    // Predicated region
    $region18: #{tpu_custom_call.1} parent=1 // pred_check
      _
    $region19: #{tpu_custom_call.1} parent=1 // pred_check_branch
      %64 = sbr.rel (0) target = $region21
    $region20: #{tpu_custom_call.1} parent=1 // pred_region
      %66 = vsyncadd [#allocation4], 0
      %s68 = sshll.u32 [#allocation7], 4
      %s69 = int_to_ptr.vmem [resolvable:$true] %s68
      %s70 = sshll.u32 %s2, 4
      %s71 = int_to_ptr.hbm [resolvable:$true] %s70
      %73 = dma.vmem_to_hbm [thread:$0]  %s69, 256, %s71, [#allocation4]
    $region21: #{tpu_custom_call.1} parent=1 // pred_fallthru
      _
    // Predicated region
    $region22: #{tpu_custom_call.1} parent=1 // pred_check
      _
    $region23: #{tpu_custom_call.1} parent=1 // pred_check_branch
      %75 = sbr.rel (0) target = $region25
    $region24: #{tpu_custom_call.1} parent=1 // pred_region
      %77 = dma.done [#allocation4], 256
    $region25: #{tpu_custom_call.1} parent=1 // pred_fallthru
      _
    %78 = vsyncpa [#allocation3], 1
    %79 = vsyncpa [#allocation4], 1
    %80 = vsyncpa [#allocation5], 1

</llo_original>
